<compile_context>
chip_gen: v7x
topology: tpu7x:2x2x1
jax: 0.10.0
libtpu: 0.0.40
codegen_flags: <defaults>
</compile_context>

<pallas_src>
import functools

import jax
import jax.numpy as jnp
from jax.experimental import pallas as pl
from jax.experimental.pallas import tpu as pltpu


# ----------------------------------------------------------------------------
# Kernel body
# ----------------------------------------------------------------------------
def _simam_kernel(x_ref, o_ref, *, reduce_axis, inv_hw, four_over_n, four_lambda):
    """SimAM on one VMEM block.

    `reduce_axis` is the block axis carrying the full H*W extent (1 for the
    row-major (B*C, H*W) layout, 0 for the lane-dense transposed layout).  The
    other axis enumerates independent (b, c) feature maps.
    """
    x = x_ref[...].astype(jnp.float32)

    # Two-pass variance: mean first, then sum((x - mean)^2).  The block is
    # VMEM-resident and the kernel is HBM-bound, so the second pass is free
    # and avoids the sum(x^2) - sum(x)^2/HW cancellation.
    mean = jnp.sum(x, axis=reduce_axis, keepdims=True) * inv_hw
    diff = x - mean
    x_minus = diff * diff
    ss = jnp.sum(x_minus, axis=reduce_axis, keepdims=True)

    # e_inv = x_minus / (4 * (ss / n + lambda)) + 0.5
    denom = ss * four_over_n + four_lambda
    e_inv = x_minus * pl.reciprocal(denom, approx=False) + 0.5

    o_ref[...] = (x * jax.nn.sigmoid(e_inv)).astype(o_ref.dtype)


# ----------------------------------------------------------------------------
# Wrapper helpers
# ----------------------------------------------------------------------------
def _round_up(x, m):
    return ((x + m - 1) // m) * m


def _sublane_multiple(dtype):
    # Native sublane packing: 8 rows for 4-byte, 16 for 2-byte, 32 for 1-byte.
    return {4: 8, 2: 16, 1: 32}.get(jnp.dtype(dtype).itemsize, 8)


def _tpu_generation_params():
    """Returns (target_block_bytes, vmem_budget, vmem_limit_cap, num_tensorcores)."""
    try:
        kind = jax.devices()[0].device_kind.lower()
    except Exception:
        kind = ""
    if "v7" in kind:
        # v7x: 64 MiB physical VMEM per TensorCore, 2 TensorCores per chip.
        return 3 << 20, 44 << 20, 48 << 20, 2
    if any(g in kind for g in ("v2", "v3", "v4", "v5", "v6")):
        # 128 MiB physical VMEM, single TensorCore drives the grid.
        return 6 << 20, 96 << 20, 100 << 20, 1
    # Unknown / future generation: assume the tighter v7x-style budget.
    return 3 << 20, 44 << 20, 48 << 20, 2


def _vmem_usage_bytes(block_elems, itemsize, in_bufs, out_bufs, f32_tmps=3):
    # Pipeline buffers hold the I/O dtype; kernel temporaries are f32 (this is
    # what doubles the footprint for bf16 inputs).
    return block_elems * ((in_bufs + out_bufs) * itemsize + f32_tmps * 4)


def _simam_2d(x2d, *, reduce_axis, lambdax, gen_params):
    """Runs the fused SimAM kernel over a 2-D slab.

    Axis `reduce_axis` of `x2d` holds the full H*W extent; the other axis
    enumerates (b, c) feature maps and is tiled by the 1-D grid.
    """
    target_block_bytes, vmem_budget, vmem_cap, num_tc = gen_params
    tiled_axis = 1 - reduce_axis
    n_maps = x2d.shape[tiled_axis]
    hw = x2d.shape[reduce_axis]
    itemsize = jnp.dtype(x2d.dtype).itemsize
    headroom = 4 << 20

    # Tiling granularity: sublane multiple when tiling the second-minor axis,
    # 128 when tiling the lane (minor) axis.
    gran = _sublane_multiple(x2d.dtype) if tiled_axis == 0 else 128

    bytes_per_map = hw * itemsize
    tile = max(gran, (target_block_bytes // bytes_per_map) // gran * gran)
    tile = min(tile, _round_up(n_maps, gran))

    # Large-H*W guard (v7x's 64 MiB VMEM is the risk point): shrink the block
    # until the estimated footprint fits the per-generation budget.
    in_bufs = out_bufs = 2
    while (tile > gran and
           _vmem_usage_bytes(tile * hw, itemsize, in_bufs, out_bufs) + headroom > vmem_budget):
        tile = max(gran, (tile // 2) // gran * gran)
    # Last resort before overflowing VMEM: give up double-buffering (output
    # first, then input).  Only kicks in for enormous H*W on small-VMEM parts.
    if _vmem_usage_bytes(tile * hw, itemsize, in_bufs, out_bufs) + headroom > vmem_budget:
        out_bufs = 1
        if _vmem_usage_bytes(tile * hw, itemsize, in_bufs, out_bufs) + headroom > vmem_budget:
            in_bufs = 1
    # TODO(synk): if even a single minimum-size block exceeds the budget, a
    # column-chunked two-pass reduction (H*W chunks on an 'arbitrary' grid
    # axis with mean/ss accumulators in VMEM scratch) would be required.

    # v7x: keep the number of grid steps a multiple of the TensorCore count so
    # the 'parallel' axis shards evenly across both cores.
    if num_tc > 1 and n_maps >= num_tc * gran:
        steps = pl.cdiv(n_maps, tile)
        desired = _round_up(max(steps, num_tc), num_tc)
        cand = _round_up(pl.cdiv(n_maps, desired), gran)  # cand <= tile
        if pl.cdiv(n_maps, cand) % num_tc == 0:
            tile = cand

    usage = _vmem_usage_bytes(tile * hw, itemsize, in_bufs, out_bufs)
    vmem_limit = int(min(max(32 << 20, usage + 2 * headroom), vmem_cap))

    if tiled_axis == 0:
        block_shape = (tile, hw)
        index_map = lambda i: (i, 0)
    else:
        block_shape = (hw, tile)
        index_map = lambda i: (0, i)

    def _spec(n_bufs):
        if n_bufs == 2:  # default double-buffering
            return pl.BlockSpec(block_shape, index_map)
        return pl.BlockSpec(block_shape, index_map, pipeline_mode=pl.Buffered(n_bufs))

    kernel = functools.partial(
        _simam_kernel,
        reduce_axis=reduce_axis,
        inv_hw=1.0 / float(hw),
        four_over_n=4.0 / float(hw - 1),
        four_lambda=4.0 * float(lambdax),
    )

    return pl.pallas_call(
        kernel,
        out_shape=jax.ShapeDtypeStruct(x2d.shape, x2d.dtype),
        grid_spec=pltpu.PrefetchScalarGridSpec(
            num_scalar_prefetch=0,
            grid=(pl.cdiv(n_maps, tile),),
            in_specs=[_spec(in_bufs)],
            out_specs=_spec(out_bufs),
        ),
        compiler_params=pltpu.CompilerParams(
            dimension_semantics=("parallel",),
            vmem_limit_bytes=vmem_limit,
        ),
    )(x2d)


def simam_pallas(x, lambdax=1e-5):
    """SimAM forward for an NCHW tensor: x * sigmoid(e_inv)."""
    b, c, h, w = x.shape
    rows, cols = b * c, h * w
    if cols < 2:
        # n = H*W - 1 == 0 is degenerate in the PyTorch reference too (NaNs).
        raise ValueError("SimAM requires H*W >= 2.")

    gen_params = _tpu_generation_params()
    x2d = x.reshape(rows, cols)

    # Lane-dense repack: when H*W is not a multiple of 128 (e.g. 7x7=49,
    # 14x14=196) the natural (B*C, H*W) layout wastes lanes and forces masked
    # partial stores; if B*C is lane-friendly, present the slab transposed so
    # the 128-lane axis carries B*C and the reduction runs over sublanes.
    if cols % 128 != 0 and rows >= 128:
        out2d = _simam_2d(x2d.T, reduce_axis=0, lambdax=lambdax,
                          gen_params=gen_params).T
    else:
        out2d = _simam_2d(x2d, reduce_axis=1, lambdax=lambdax,
                          gen_params=gen_params)
    return out2d.reshape(b, c, h, w)


def simam_ref(x, lambdax=1e-5):
    """Pure-JAX reference mirroring the PyTorch forward."""
    x = x.astype(jnp.float32)
    b, c, h, w = x.shape
    n = w * h - 1
    x_minus = (x - x.mean(axis=(2, 3), keepdims=True)) ** 2
    e_inv = x_minus / (4 * (x_minus.sum(axis=(2, 3), keepdims=True) / n + lambdax)) + 0.5
    return x * jax.nn.sigmoid(e_inv)


if __name__ == "__main__":
    key = jax.random.PRNGKey(0)
    k0, k1 = jax.random.split(key)

    # Primary check: small NCHW shape consistent with the module's forward
    # (row-major layout, lane axis = H*W = 256).
    x = jax.random.normal(k0, (2, 4, 16, 16), dtype=jnp.float32)
    out = jax.block_until_ready(simam_pallas(x))
    ref = simam_ref(x)
    assert out.shape == x.shape
    assert jnp.allclose(out, ref, atol=1e-4, rtol=1e-4), "mismatch (row layout)"

    # Secondary check: exercises the lane-dense transposed path
    # (H*W = 49, not a multiple of 128; B*C = 256).
    x2 = jax.random.normal(k1, (4, 64, 7, 7), dtype=jnp.float32)
    out2 = jax.block_until_ready(simam_pallas(x2))
    assert jnp.allclose(out2, simam_ref(x2), atol=1e-4, rtol=1e-4), \
        "mismatch (lane-dense layout)"

    print("KERNEL_OK")
</pallas_src>

<mosaic_0001>
module attributes {stable_mosaic.version = 11 : i64} {
  func.func @_simam_kernel(%arg0: i32, %arg1: memref<8x256xf32, #tpu.memory_space<vmem>>, %arg2: memref<8x256xf32, #tpu.memory_space<vmem>>) attributes {dimension_semantics = [#tpu.dimension_semantics<parallel>], iteration_bounds = array<i64: 1>, scalar_prefetch = 0 : i64, scratch_operands = 0 : i64, tpu.core_type = #tpu.core_type<tc>, window_params = [{transform_indices = @transform_0, window_bounds = array<i64: 8, 256>}, {transform_indices = @transform_1, window_bounds = array<i64: 8, 256>}]} {
    %c0 = arith.constant 0 : index
    %c0_0 = arith.constant 0 : index
    %0 = vector.load %arg1[%c0, %c0_0] : memref<8x256xf32, #tpu.memory_space<vmem>>, vector<8x256xf32>
    %cst = arith.constant dense<0.000000e+00> : vector<8xf32>
    %1 = vector.multi_reduction <add>, %0, %cst [1] : vector<8x256xf32> to vector<8xf32>
    %2 = vector.shape_cast %1 : vector<8xf32> to vector<8x1xf32>
    %cst_1 = arith.constant 3.906250e-03 : f32
    %3 = vector.broadcast %cst_1 : f32 to vector<8x1xf32>
    %4 = arith.mulf %2, %3 : vector<8x1xf32>
    %5 = vector.broadcast %4 : vector<8x1xf32> to vector<8x256xf32>
    %6 = arith.subf %0, %5 : vector<8x256xf32>
    %7 = arith.mulf %6, %6 : vector<8x256xf32>
    %cst_2 = arith.constant dense<0.000000e+00> : vector<8xf32>
    %8 = vector.multi_reduction <add>, %7, %cst_2 [1] : vector<8x256xf32> to vector<8xf32>
    %9 = vector.shape_cast %8 : vector<8xf32> to vector<8x1xf32>
    %cst_3 = arith.constant 0.0156862754 : f32
    %10 = vector.broadcast %cst_3 : f32 to vector<8x1xf32>
    %11 = arith.mulf %9, %10 : vector<8x1xf32>
    %cst_4 = arith.constant 4.000000e-05 : f32
    %12 = vector.broadcast %cst_4 : f32 to vector<8x1xf32>
    %13 = arith.addf %11, %12 : vector<8x1xf32>
    %14 = tpu.reciprocal %13 : vector<8x1xf32> -> vector<8x1xf32>
    %15 = vector.broadcast %14 : vector<8x1xf32> to vector<8x256xf32>
    %16 = arith.mulf %7, %15 : vector<8x256xf32>
    %cst_5 = arith.constant 5.000000e-01 : f32
    %17 = vector.broadcast %cst_5 : f32 to vector<8x256xf32>
    %18 = arith.addf %16, %17 : vector<8x256xf32>
    %19 = arith.negf %18 : vector<8x256xf32>
    %20 = math.exp %19 : vector<8x256xf32>
    %cst_6 = arith.constant 1.000000e+00 : f32
    %21 = vector.broadcast %cst_6 : f32 to vector<8x256xf32>
    %22 = arith.addf %21, %20 : vector<8x256xf32>
    %23 = arith.divf %21, %22 : vector<8x256xf32>
    %24 = arith.mulf %0, %23 : vector<8x256xf32>
    %c0_7 = arith.constant 0 : index
    %c0_8 = arith.constant 0 : index
    %25 = vector.load %arg2[%c0_7, %c0_8] : memref<8x256xf32, #tpu.memory_space<vmem>>, vector<8x256xf32>
    tpu.vector_store %arg2[%c0_7, %c0_8], %24 {strides = array<i32>} : memref<8x256xf32, #tpu.memory_space<vmem>>, vector<8x256xf32>,
    return
  }
  func.func @transform_0(%arg0: i32) -> (i32, i32) {
    %c0_i32 = arith.constant 0 : i32
    %c0_i32_0 = arith.constant 0 : i32
    return %arg0, %c0_i32 : i32, i32
  }
  func.func @transform_1(%arg0: i32) -> (i32, i32) {
    %c0_i32 = arith.constant 0 : i32
    %c0_i32_0 = arith.constant 0 : i32
    return %arg0, %c0_i32 : i32, i32
  }
}

</mosaic_0001>

<llo_original>
// kernel: tpu_custom_call.1
$region0: #{tpu_custom_call.1}
  #allocation0 [shape = 'u32[]', space=smem, size = 0x4, offset = 0x4, fixed_abs, tag = 'smem constant byte address 0x4 - core index']
  #allocation1 [shape = 'u32[144,128]{1,0:T(1,128)}', space=vmem, size = 0x12000, scoped, tag = 'internal scratch']
  %s0 = inlined_call_operand.hbm [shape: f32[8,256], index: 0, kind: input, shape index: {}]
  %s1 = inlined_call_operand.hbm [shape: f32[8,256], index: 1, kind: output, shape index: {}]
  %s2 = sld [smem:[#allocation0]]
  $region18: #{tpu_custom_call.1} parent=0
    _
  %s4 = ssub.s32 1, %s2
  %s5 = scalar_select 0, %s4, %s2
  $region1: #{tpu_custom_call.1} parent=0
    #allocation2 [shape = 'u8[8192]{0}', space=vmem, size = 0x2000, scoped, tag = 'input window, operand 0, single buffered']
    #allocation3 [shape = 's32[1]{0}', space=sflag, size = 0x4, scoped, tag = 'scoped memory for tpu_custom_call.1']
    #allocation4 [shape = 's32[1]{0}', space=sflag, size = 0x4, scoped, tag = 'scoped memory for tpu_custom_call.1']
    #allocation5 [shape = 'u8[8192]{0}', space=vmem, size = 0x2000, scoped, tag = 'output window, operand 0, single buffered']
    %6 = vsyncpa [#allocation3], 0
    %7 = vsyncpa [#allocation4], 0
    // Predicated region
    $region2: #{tpu_custom_call.1} parent=1 // pred_check
      _
    $region3: #{tpu_custom_call.1} parent=1 // pred_check_branch
      %9 = sbr.rel (0) target = $region5
    $region4: #{tpu_custom_call.1} parent=1 // pred_region
      %s11 = ssub.s32 256, 256
      %12 = vsyncadd [#allocation3], %s11
      %s14 = sshll.u32 [#allocation2], 4
      %s15 = int_to_ptr.vmem [resolvable:$true] %s14
      %17 = dma.hbm_to_vmem [thread:$0]  %s0, 256, %s15, [#allocation3]
    $region5: #{tpu_custom_call.1} parent=1 // pred_fallthru
      _
    // Predicated region
    $region6: #{tpu_custom_call.1} parent=1 // pred_check
      _
    $region7: #{tpu_custom_call.1} parent=1 // pred_check_branch
      %19 = sbr.rel (0) target = $region9
    $region8: #{tpu_custom_call.1} parent=1 // pred_region
      %20 = dma.done [#allocation3], 256
    $region9: #{tpu_custom_call.1} parent=1 // pred_fallthru
      _
    %v21 = vld [vmem:[#allocation2] sm:$0xff]
    %v22 = vld [vmem:[#allocation2 + $0x8] sm:$0xff]
    %v23 = vadd.f32 %v21, %v22
    %24 = vadd.xlane.f32.xlu0 %v23
    %v25 = vpop.xlane.xlu0 %24
    %v26 = vmul.f32 %v25, 0.00390625
    %v27 = vsub.f32 %v21, %v26
    %v28 = vsub.f32 %v22, %v26
    %v29 = vmul.f32 %v27, %v27
    %v30 = vmul.f32 %v28, %v28
    %v31 = vadd.f32 %v29, %v30
    %32 = vadd.xlane.f32.xlu0 %v31
    %v33 = vpop.xlane.xlu0 %32
    %v34 = vmul.f32 %v33, 0.015686275
    %v35 = vadd.f32 %v34, 4e-05
    %v36 = vrcp.pop %v35
    %v37 = vmul.f32 %v29, %v36
    %v38 = vmul.f32 %v30, %v36
    %v39 = vadd.f32 %v37, 0.5
    %v40 = vadd.f32 %v38, 0.5
    %v41 = vxor.u32 %v39, 2147483648
    %v42 = vxor.u32 %v40, 2147483648
    %v43 = vmul.f32 %v41, 1.442695
    %v44 = vpow.pop %v43
    %v45 = vmul.f32 %v42, 1.442695
    %v46 = vpow.pop %v45
    %v47 = vadd.f32 %v44, 1.0
    %v48 = vadd.f32 %v46, 1.0
    %v49 = vrcp.pop %v47
    %v50 = vmul.f32 1.0, %v49
    %v51 = vrcp.pop %v48
    %v52 = vmul.f32 1.0, %v51
    %v53 = vmul.f32 %v21, %v50
    %v54 = vmul.f32 %v22, %v52
    %55 = vst [vmem:[#allocation5] sm:$0xff] %v53
    %56 = vst [vmem:[#allocation5 + $0x8] sm:$0xff] %v54
    // Predicated region
    $region10: #{tpu_custom_call.1} parent=1 // pred_check
      _
    $region11: #{tpu_custom_call.1} parent=1 // pred_check_branch
      %58 = sbr.rel (0) target = $region13
    $region12: #{tpu_custom_call.1} parent=1 // pred_region
      %s60 = ssub.s32 256, 256
      %61 = vsyncadd [#allocation4], %s60
      %s63 = sshll.u32 [#allocation5], 4
      %s64 = int_to_ptr.vmem [resolvable:$true] %s63
      %66 = dma.vmem_to_hbm [thread:$0]  %s64, 256, %s1, [#allocation4]
    $region13: #{tpu_custom_call.1} parent=1 // pred_fallthru
      _
    // Predicated region
    $region14: #{tpu_custom_call.1} parent=1 // pred_check
      _
    $region15: #{tpu_custom_call.1} parent=1 // pred_check_branch
      %68 = sbr.rel (0) target = $region17
    $region16: #{tpu_custom_call.1} parent=1 // pred_region
      %69 = dma.done [#allocation4], 256
    $region17: #{tpu_custom_call.1} parent=1 // pred_fallthru
      _
    %70 = vsyncpa [#allocation3], 1
    %71 = vsyncpa [#allocation4], 1

</llo_original>
